<compile_context>
chip_gen: v7x
topology: tpu7x:2x2x1
jax: 0.10.0
libtpu: 0.0.40
codegen_flags: <defaults>
</compile_context>

<pallas_src>
import functools

import jax
import jax.numpy as jnp
from jax import lax
from jax.experimental import pallas as pl
from jax.experimental.pallas import tpu as pltpu

block_size = 32     # T
n_embd = 64         # C
head_size = 16      # H
dropout = 0.0       # TODO(synk): dropout > 0 would need pltpu.prng_seed/prng_random_bits masking


def head_kernel(x_ref, wqkv_ref, bqkv_ref, o_ref):
    Bt, T, C = x_ref.shape
    H = o_ref.shape[-1]

    # ---- Fused QKV projection: one MXU matmul on a (Bt*T, C) slab.
    x2d = x_ref[...].reshape(Bt * T, C)                                   # (Bt*T, C)
    qkv = jnp.dot(x2d, wqkv_ref[...],
                  preferred_element_type=jnp.float32) + bqkv_ref[...]     # (Bt*T, 3H)
    qkv = qkv.reshape(Bt, T, 3 * H)
    q = qkv[:, :, 0 * H:1 * H]                                            # (Bt, T, H)
    k = qkv[:, :, 1 * H:2 * H]                                            # (Bt, T, H)
    v = qkv[:, :, 2 * H:3 * H]                                            # (Bt, T, H)

    # ---- Attention scores: batched contraction over H (no k.T / XLU transpose),
    #      scaled by C**-0.5 to match the PyTorch module exactly.
    wei = lax.dot_general(
        q, k,
        dimension_numbers=(((2,), (2,)), ((0,), (0,))),
        preferred_element_type=jnp.float32) * (C ** -0.5)                 # (Bt, T, T)

    # ---- Causal mask (tril): positions where col > row get -inf.
    row = lax.broadcasted_iota(jnp.int32, (T, T), 0)
    col = lax.broadcasted_iota(jnp.int32, (T, T), 1)
    wei = jnp.where((col <= row)[None, :, :], wei, -jnp.inf)

    # ---- Numerically stable softmax (f32); reciprocal on the EUP.
    wei_max = jnp.max(wei, axis=-1, keepdims=True)
    e = jnp.exp(wei - wei_max)
    denom = jnp.sum(e, axis=-1, keepdims=True)
    p = e * pl.reciprocal(denom, approx=True)

    # ---- Weighted aggregation of values (batched matmul).
    o_ref[...] = lax.dot_general(
        p, v,
        dimension_numbers=(((2,), (1,)), ((0,), (0,))),
        preferred_element_type=jnp.float32)                               # (Bt, T, H)


def head_forward(x, wqkv, bqkv, *, batch_tile=None):
    """x: (B, T, C); wqkv: (C, 3H) packed [Wq | Wk | Wv]; bqkv: (1, 3H)."""
    B, T, C = x.shape
    H3 = wqkv.shape[1]
    H = H3 // 3
    if batch_tile is None:
        batch_tile = B          # collapse the grid: one step handles the whole batch
    grid = (pl.cdiv(B, batch_tile),)
    return pl.pallas_call(
        head_kernel,
        out_shape=jax.ShapeDtypeStruct((B, T, H), jnp.float32),
        grid_spec=pltpu.PrefetchScalarGridSpec(
            num_scalar_prefetch=0,
            grid=grid,
            in_specs=[
                pl.BlockSpec((batch_tile, T, C), lambda i: (i, 0, 0)),  # x batch tile
                pl.BlockSpec((C, H3), lambda i: (0, 0)),                # fused W_qkv
                pl.BlockSpec((1, H3), lambda i: (0, 0)),                # fused b_qkv
            ],
            out_specs=pl.BlockSpec((batch_tile, T, H), lambda i: (i, 0, 0)),
        ),
        compiler_params=pltpu.CompilerParams(
            dimension_semantics=("parallel",),
        ),
    )(x, wqkv, bqkv)


def pack_qkv(wq, bq, wk, bk, wv, bv):
    """Pack per-projection (C, H) weights / (1, H) biases into fused (C, 3H)/(1, 3H)."""
    wqkv = jnp.concatenate([wq, wk, wv], axis=1)
    bqkv = jnp.concatenate([bq, bk, bv], axis=1)
    return wqkv, bqkv


def reference_forward(x, wk, bk, wq, bq, wv, bv):
    B, T, C = x.shape
    k = x @ wk + bk
    q = x @ wq + bq
    v = x @ wv + bv
    wei = (q @ jnp.swapaxes(k, -2, -1)) * (C ** -0.5)
    mask = jnp.tril(jnp.ones((T, T), dtype=bool))
    wei = jnp.where(mask, wei, -jnp.inf)
    wei = jax.nn.softmax(wei, axis=-1)
    return wei @ v


if __name__ == "__main__":
    key = jax.random.PRNGKey(0)
    kx, kk, kbk, kq, kbq, kv, kbv = jax.random.split(key, 7)

    B, T, C, H = 2, block_size, n_embd, head_size

    x = jax.random.normal(kx, (B, T, C), dtype=jnp.float32)

    # Deterministic synthetic parameters (nn.Linear has weight + bias);
    # stored as (C, H) so the kernel computes x @ W + b directly.
    scale = 1.0 / jnp.sqrt(C)
    wk = jax.random.normal(kk, (C, H), dtype=jnp.float32) * scale
    bk = jax.random.normal(kbk, (1, H), dtype=jnp.float32) * 0.1
    wq = jax.random.normal(kq, (C, H), dtype=jnp.float32) * scale
    bq = jax.random.normal(kbq, (1, H), dtype=jnp.float32) * 0.1
    wv = jax.random.normal(kv, (C, H), dtype=jnp.float32) * scale
    bv = jax.random.normal(kbv, (1, H), dtype=jnp.float32) * 0.1

    wqkv, bqkv = pack_qkv(wq, bq, wk, bk, wv, bv)

    out = head_forward(x, wqkv, bqkv)
    jax.block_until_ready(out)

    ref = reference_forward(x, wk, bk, wq, bq, wv, bv)
    assert out.shape == (B, T, H)
    # Tolerance accounts for the EUP approximate reciprocal in the softmax.
    assert jnp.allclose(out, ref, atol=2e-3, rtol=2e-3), "mismatch vs reference"

    print("KERNEL_OK")
</pallas_src>

<mosaic_0001>
module attributes {stable_mosaic.version = 11 : i64} {
  func.func @head_kernel(%arg0: i32, %arg1: memref<2x32x64xf32, #tpu.memory_space<vmem>>, %arg2: memref<64x48xf32, #tpu.memory_space<vmem>>, %arg3: memref<1x48xf32, #tpu.memory_space<vmem>>, %arg4: memref<2x32x16xf32, #tpu.memory_space<vmem>>) attributes {dimension_semantics = [#tpu.dimension_semantics<parallel>], iteration_bounds = array<i64: 1>, scalar_prefetch = 0 : i64, scratch_operands = 0 : i64, tpu.core_type = #tpu.core_type<tc>, window_params = [{transform_indices = @transform_0, window_bounds = array<i64: 2, 32, 64>}, {pipeline_mode = #tpu.pipeline_mode<synchronous>, transform_indices = @transform_1, window_bounds = array<i64: 64, 48>}, {pipeline_mode = #tpu.pipeline_mode<synchronous>, transform_indices = @transform_2, window_bounds = array<i64: 1, 48>}, {transform_indices = @transform_3, window_bounds = array<i64: 2, 32, 16>}]} {
    %c0 = arith.constant 0 : index
    %c0_0 = arith.constant 0 : index
    %c0_1 = arith.constant 0 : index
    %0 = vector.load %arg1[%c0, %c0_0, %c0_1] : memref<2x32x64xf32, #tpu.memory_space<vmem>>, vector<2x32x64xf32>
    %1 = vector.shape_cast %0 : vector<2x32x64xf32> to vector<64x64xf32>
    %c0_2 = arith.constant 0 : index
    %c0_3 = arith.constant 0 : index
    %2 = vector.load %arg2[%c0_2, %c0_3] : memref<64x48xf32, #tpu.memory_space<vmem>>, vector<64x48xf32>
    %cst = arith.constant dense<0.000000e+00> : vector<64x48xf32>
    %3 = tpu.matmul %1, %2, %cst {dimension_numbers = #tpu.dot_dimension_numbers<[1], [0], [0], [1], [0, 0, 1, 1], [], []>} : vector<64x64xf32>, vector<64x48xf32>, vector<64x48xf32> -> vector<64x48xf32>
    %c0_4 = arith.constant 0 : index
    %c0_5 = arith.constant 0 : index
    %4 = vector.load %arg3[%c0_4, %c0_5] : memref<1x48xf32, #tpu.memory_space<vmem>>, vector<1x48xf32>
    %5 = vector.broadcast %4 : vector<1x48xf32> to vector<64x48xf32>
    %6 = arith.addf %3, %5 : vector<64x48xf32>
    %7 = vector.shape_cast %6 : vector<64x48xf32> to vector<2x32x48xf32>
    %8 = vector.extract_strided_slice %7 {offsets = [0, 0, 0], sizes = [2, 32, 16], strides = [1, 1, 1]} : vector<2x32x48xf32> to vector<2x32x16xf32>
    %9 = vector.extract_strided_slice %7 {offsets = [0, 0, 16], sizes = [2, 32, 16], strides = [1, 1, 1]} : vector<2x32x48xf32> to vector<2x32x16xf32>
    %10 = vector.extract_strided_slice %7 {offsets = [0, 0, 32], sizes = [2, 32, 16], strides = [1, 1, 1]} : vector<2x32x48xf32> to vector<2x32x16xf32>
    %cst_6 = arith.constant dense<0.000000e+00> : vector<2x32x32xf32>
    %11 = tpu.matmul %8, %9, %cst_6 {dimension_numbers = #tpu.dot_dimension_numbers<[2], [2], [1], [1], [0, 0, 0, 1, 1, 1], [0], [0]>} : vector<2x32x16xf32>, vector<2x32x16xf32>, vector<2x32x32xf32> -> vector<2x32x32xf32>
    %cst_7 = arith.constant 1.250000e-01 : f32
    %12 = vector.broadcast %cst_7 : f32 to vector<2x32x32xf32>
    %13 = arith.mulf %11, %12 : vector<2x32x32xf32>
    %14 = tpu.iota {dimensions = array<i32: 0>} : vector<32x32xi32>
    %15 = tpu.iota {dimensions = array<i32: 1>} : vector<32x32xi32>
    %16 = arith.cmpi sle, %15, %14 : vector<32x32xi32>
    %17 = vector.shape_cast %16 : vector<32x32xi1> to vector<1x32x32xi1>
    %cst_8 = arith.constant 0xFF800000 : f32
    %18 = vector.shape_cast %17 : vector<1x32x32xi1> to vector<1x32x32xi1>
    %19 = vector.broadcast %18 : vector<1x32x32xi1> to vector<2x32x32xi1>
    %20 = vector.broadcast %cst_8 : f32 to vector<2x32x32xf32>
    %21 = arith.select %19, %13, %20 : vector<2x32x32xi1>, vector<2x32x32xf32>
    %cst_9 = arith.constant dense<0xFF800000> : vector<2x32xf32>
    %22 = vector.multi_reduction <maximumf>, %21, %cst_9 [2] : vector<2x32x32xf32> to vector<2x32xf32>
    %23 = vector.shape_cast %22 : vector<2x32xf32> to vector<2x32x1xf32>
    %24 = vector.broadcast %23 : vector<2x32x1xf32> to vector<2x32x32xf32>
    %25 = arith.subf %21, %24 : vector<2x32x32xf32>
    %26 = math.exp %25 : vector<2x32x32xf32>
    %cst_10 = arith.constant dense<0.000000e+00> : vector<2x32xf32>
    %27 = vector.multi_reduction <add>, %26, %cst_10 [2] : vector<2x32x32xf32> to vector<2x32xf32>
    %28 = vector.shape_cast %27 : vector<2x32xf32> to vector<2x32x1xf32>
    %29 = tpu.reciprocal %28 {approx = true} : vector<2x32x1xf32> -> vector<2x32x1xf32>
    %30 = vector.broadcast %29 : vector<2x32x1xf32> to vector<2x32x32xf32>
    %31 = arith.mulf %26, %30 : vector<2x32x32xf32>
    %cst_11 = arith.constant dense<0.000000e+00> : vector<2x32x16xf32>
    %32 = tpu.matmul %31, %10, %cst_11 {dimension_numbers = #tpu.dot_dimension_numbers<[2], [1], [1], [2], [0, 0, 0, 1, 1, 2], [0], [0]>} : vector<2x32x32xf32>, vector<2x32x16xf32>, vector<2x32x16xf32> -> vector<2x32x16xf32>
    %c0_12 = arith.constant 0 : index
    %c0_13 = arith.constant 0 : index
    %c0_14 = arith.constant 0 : index
    %33 = vector.load %arg4[%c0_12, %c0_13, %c0_14] : memref<2x32x16xf32, #tpu.memory_space<vmem>>, vector<2x32x16xf32>
    tpu.vector_store %arg4[%c0_12, %c0_13, %c0_14], %32 {strides = array<i32>} : memref<2x32x16xf32, #tpu.memory_space<vmem>>, vector<2x32x16xf32>,
    return
  }
  func.func @transform_0(%arg0: i32) -> (i32, i32, i32) {
    %c0_i32 = arith.constant 0 : i32
    %c0_i32_0 = arith.constant 0 : i32
    %c0_i32_1 = arith.constant 0 : i32
    return %arg0, %c0_i32, %c0_i32_0 : i32, i32, i32
  }
  func.func @transform_1(%arg0: i32) -> (i32, i32) {
    %c0_i32 = arith.constant 0 : i32
    %c0_i32_0 = arith.constant 0 : i32
    %c0_i32_1 = arith.constant 0 : i32
    return %c0_i32, %c0_i32_0 : i32, i32
  }
  func.func @transform_2(%arg0: i32) -> (i32, i32) {
    %c0_i32 = arith.constant 0 : i32
    %c0_i32_0 = arith.constant 0 : i32
    %c0_i32_1 = arith.constant 0 : i32
    return %c0_i32, %c0_i32_0 : i32, i32
  }
  func.func @transform_3(%arg0: i32) -> (i32, i32, i32) {
    %c0_i32 = arith.constant 0 : i32
    %c0_i32_0 = arith.constant 0 : i32
    %c0_i32_1 = arith.constant 0 : i32
    return %arg0, %c0_i32, %c0_i32_0 : i32, i32, i32
  }
}

</mosaic_0001>

<llo_original>
// kernel: tpu_custom_call.1
$region0: #{tpu_custom_call.1}
  #allocation0 [shape = 'u32[]', space=smem, size = 0x4, offset = 0x4, fixed_abs, tag = 'smem constant byte address 0x4 - core index']
  #allocation1 [shape = 'u32[144,128]{1,0:T(1,128)}', space=vmem, size = 0x12000, scoped, tag = 'internal scratch']
  %s0 = inlined_call_operand.vmem [shape: f32[2,32,64], index: 0, kind: input, shape index: {}]
  %s1 = inlined_call_operand.vmem [shape: f32[64,48], index: 1, kind: input, shape index: {}]
  %s2 = inlined_call_operand.vmem [shape: f32[1,48], index: 2, kind: input, shape index: {}]
  %s3 = inlined_call_operand.vmem [shape: f32[2,32,16], index: 3, kind: output, shape index: {}]
  %s4 = sld [smem:[#allocation0]]
  $region22: #{tpu_custom_call.1} parent=0
    _
  %s6 = ssub.s32 1, %s4
  %s7 = scalar_select 0, %s6, %s4
  // Predicated region
  $region2: #{tpu_custom_call.1} parent=0 // pred_check
    _
  $region3: #{tpu_custom_call.1} parent=0 // pred_check_branch
    %9 = sbr.rel (0) target = $region5
  $region4: #{tpu_custom_call.1} parent=0 // pred_region
    _
  $region5: #{tpu_custom_call.1} parent=0 // pred_fallthru
    _
  // Predicated region
  $region6: #{tpu_custom_call.1} parent=0 // pred_check
    _
  $region7: #{tpu_custom_call.1} parent=0 // pred_check_branch
    %11 = sbr.rel (0) target = $region9
  $region8: #{tpu_custom_call.1} parent=0 // pred_region
    _
  $region9: #{tpu_custom_call.1} parent=0 // pred_fallthru
    _
  // Predicated region
  $region10: #{tpu_custom_call.1} parent=0 // pred_check
    _
  $region11: #{tpu_custom_call.1} parent=0 // pred_check_branch
    %13 = sbr.rel (0) target = $region13
  $region12: #{tpu_custom_call.1} parent=0 // pred_region
    _
  $region13: #{tpu_custom_call.1} parent=0 // pred_fallthru
    _
  %v14 = vld [vmem:[%s0] sm:$0xff]
  %v15 = vld [vmem:[%s0 + $0x8] sm:$0xff]
  %v16 = vld [vmem:[%s0 + $0x10] sm:$0xff]
  %v17 = vld [vmem:[%s0 + $0x18] sm:$0xff]
  %v18 = vld [vmem:[%s0 + $0x20] sm:$0xff]
  %v19 = vld [vmem:[%s0 + $0x28] sm:$0xff]
  %v20 = vld [vmem:[%s0 + $0x30] sm:$0xff]
  %v21 = vld [vmem:[%s0 + $0x38] sm:$0xff]
  %v22 = vld [vmem:[%s1] sm:$0xff]
  %v23 = vld [vmem:[%s1 + $0x8] sm:$0xff]
  %v24 = vld [vmem:[%s1 + $0x10] sm:$0xff]
  %v25 = vld [vmem:[%s1 + $0x18] sm:$0xff]
  %v26 = vld [vmem:[%s1 + $0x20] sm:$0xff]
  %v27 = vld [vmem:[%s1 + $0x28] sm:$0xff]
  %v28 = vld [vmem:[%s1 + $0x30] sm:$0xff]
  %v29 = vld [vmem:[%s1 + $0x38] sm:$0xff]
  %v30 = vld [vmem:[%s2] sm:$0x1]
  %v32 = vlaneseq
  %v33 = vshrl.u32 %v32, 7
  %v34 = vsub.s32 0, %v33
  %v35 = vrot.slane %v30, %v34
  %vm37 = vcmask 523264
  %v39 = vsel %vm37, %v14, 0
  %v42 = vsel %vm37, %v15, 0
  %v45 = vsel %vm37, %v16, 0
  %v48 = vsel %vm37, %v17, 0
  %v51 = vsel %vm37, %v18, 0
  %v54 = vsel %vm37, %v19, 0
  %v57 = vsel %vm37, %v20, 0
  %v60 = vsel %vm37, %v21, 0
  %62 = vmatprep.subr.mxu0 0.0
  %63 = vmatpush1.msra.mxu0 %v22
  %64 = vmatprep.subr.mxu0 0.0
  %65 = vmatpush1.msra.mxu0 %v23
  %66 = vmatprep.subr.mxu0 0.0
  %67 = vmatpush1.msra.mxu0 %v24
  %68 = vmatprep.subr.mxu0 0.0
  %69 = vmatpush1.msra.mxu0 %v25
  %70 = vmatprep.subr.mxu0 0.0
  %71 = vmatpush1.msra.mxu0 %v26
  %72 = vmatprep.subr.mxu0 0.0
  %73 = vmatpush1.msra.mxu0 %v27
  %74 = vmatprep.subr.mxu0 0.0
  %75 = vmatpush1.msra.mxu0 %v28
  %76 = vmatprep.subr.mxu0 0.0
  %77 = vmatpush1.msra.mxu0 %v29
  %78 = vmatprep.subr.mxu0 0.0
  %79 = vmatpush1.msra.mxu0 0.0
  %80 = vmatprep.subr.mxu0 0.0
  %81 = vmatpush1.msra.mxu0 0.0
  %82 = vmatprep.subr.mxu0 0.0
  %83 = vmatpush1.msra.mxu0 0.0
  %84 = vmatprep.subr.mxu0 0.0
  %85 = vmatpush1.msra.mxu0 0.0
  %86 = vmatprep.subr.mxu0 0.0
  %87 = vmatpush1.msra.mxu0 0.0
  %88 = vmatprep.subr.mxu0 0.0
  %89 = vmatpush1.msra.mxu0 0.0
  %90 = vmatprep.subr.mxu0 0.0
  %91 = vmatpush1.msra.mxu0 0.0
  %92 = vmatprep.subr.mxu0 0.0
  %93 = vmatpush1.msra.mxu0 0.0
  %94 = vmatprep.subr.mxu0 0.0
  %95 = vmatpush1.msra.mxu0 0.0
  %96 = vmatprep.subr.mxu0 0.0
  %97 = vmatpush1.msra.mxu0 0.0
  %98 = vmatprep.subr.mxu0 0.0
  %99 = vmatpush1.msra.mxu0 0.0
  %100 = vmatprep.subr.mxu0 0.0
  %101 = vmatpush1.msra.mxu0 0.0
  %102 = vmatprep.subr.mxu0 0.0
  %103 = vmatpush1.msra.mxu0 0.0
  %104 = vmatprep.subr.mxu0 0.0
  %105 = vmatpush1.msra.mxu0 0.0
  %106 = vmatprep.subr.mxu0 0.0
  %107 = vmatpush1.msra.mxu0 0.0
  %108 = vmatprep.subr.mxu0 0.0
  %109 = vmatpush1.msra.mxu0 0.0
  %110 = vmatprep.subr.mxu0 0.0
  %111 = vmatpush1.msra.mxu0 0.0
  %112 = vmatprep.subr.mxu0 0.0
  %113 = vmatpush1.msra.mxu0 0.0
  %114 = vmatprep.subr.mxu0 0.0
  %115 = vmatpush1.msra.mxu0 0.0
  %116 = vmatprep.subr.mxu0 0.0
  %117 = vmatpush1.msra.mxu0 0.0
  %118 = vmatprep.subr.mxu0 0.0
  %119 = vmatpush1.msra.mxu0 0.0
  %120 = vmatprep.subr.mxu0 0.0
  %121 = vmatpush1.msra.mxu0 0.0
  %122 = vmatprep.subr.mxu0 0.0
  %123 = vmatpush1.msra.mxu0 0.0
  %124 = vmatprep.subr.mxu0 0.0
  %125 = vmatpush1.msra.mxu0 0.0
  %126 = vmatprep.mubr.f32.mxu0 0.0
  %127 = vmatmul.mubr.f32.gmra.mrb[0].mxu0 %v39
  %v128 = vpop.f32.mrb[0].mxu0
  %v129 = vadd.f32 %v35, %v128
  %v130 = vpop.f32.mrb[0].mxu0
  %131 = vmatprep.mubr.f32.mxu0 0.0
  %132 = vmatmul.mubr.f32.gmra.mrb[0].mxu0 %v42
  %v133 = vpop.f32.mrb[0].mxu0
  %v134 = vadd.f32 %v35, %v133
  %v135 = vpop.f32.mrb[0].mxu0
  %136 = vmatprep.mubr.f32.mxu0 0.0
  %137 = vmatmul.mubr.f32.gmra.mrb[0].mxu0 %v45
  %v138 = vpop.f32.mrb[0].mxu0
  %v139 = vadd.f32 %v35, %v138
  %v140 = vpop.f32.mrb[0].mxu0
  %141 = vmatprep.mubr.f32.mxu0 0.0
  %142 = vmatmul.mubr.f32.gmra.mrb[0].mxu0 %v48
  %v143 = vpop.f32.mrb[0].mxu0
  %v144 = vadd.f32 %v35, %v143
  %v145 = vpop.f32.mrb[0].mxu0
  %146 = vmatprep.mubr.f32.mxu0 0.0
  %147 = vmatmul.mubr.f32.gmra.mrb[0].mxu0 %v51
  %v148 = vpop.f32.mrb[0].mxu0
  %v149 = vadd.f32 %v35, %v148
  %v150 = vpop.f32.mrb[0].mxu0
  %151 = vmatprep.mubr.f32.mxu0 0.0
  %152 = vmatmul.mubr.f32.gmra.mrb[0].mxu0 %v54
  %v153 = vpop.f32.mrb[0].mxu0
  %v154 = vadd.f32 %v35, %v153
  %v155 = vpop.f32.mrb[0].mxu0
  %156 = vmatprep.mubr.f32.mxu0 0.0
  %157 = vmatmul.mubr.f32.gmra.mrb[0].mxu0 %v57
  %v158 = vpop.f32.mrb[0].mxu0
  %v159 = vadd.f32 %v35, %v158
  %v160 = vpop.f32.mrb[0].mxu0
  %161 = vmatprep.mubr.f32.mxu0 0.0
  %162 = vmatmul.mubr.f32.gmra.mrb[0].mxu0 %v60
  %v163 = vpop.f32.mrb[0].mxu0
  %v164 = vadd.f32 %v35, %v163
  %v165 = vpop.f32.mrb[0].mxu0
  %166 = vdwg.mxu0
  %171 = vrot.lane.b32.xlu0 %v129, 112
  %v172 = vpop.permute.xlu0 %171
  %173 = vrot.lane.b32.xlu0 %v134, 112
  %v174 = vpop.permute.xlu0 %173
  %175 = vrot.lane.b32.xlu0 %v139, 112
  %v176 = vpop.permute.xlu0 %175
  %177 = vrot.lane.b32.xlu0 %v144, 112
  %v178 = vpop.permute.xlu0 %177
  %vm179 = vcmask 130048
  %v180 = vsel %vm179, %v129, 0
  %v182 = vsel %vm179, %v134, 0
  %v184 = vsel %vm179, %v139, 0
  %v186 = vsel %vm179, %v144, 0
  %v188 = vsel %vm179, %v172, 0
  %v190 = vsel %vm179, %v174, 0
  %v192 = vsel %vm179, %v176, 0
  %v194 = vsel %vm179, %v178, 0
  %196 = vmatprep.subr.mxu0 0.0
  %197 = vmatpush1.xpose.msra.mxu0 %v188
  %198 = vmatprep.subr.mxu0 0.0
  %199 = vmatpush1.xpose.msra.mxu0 %v190
  %200 = vmatprep.subr.mxu0 0.0
  %201 = vmatpush1.xpose.msra.mxu0 %v192
  %202 = vmatprep.subr.mxu0 0.0
  %203 = vmatpush1.xpose.msra.mxu0 %v194
  %204 = vmatprep.subr.mxu0 0.0
  %205 = vmatpush1.xpose.msra.mxu0 0.0
  %206 = vmatprep.subr.mxu0 0.0
  %207 = vmatpush1.xpose.msra.mxu0 0.0
  %208 = vmatprep.subr.mxu0 0.0
  %209 = vmatpush1.xpose.msra.mxu0 0.0
  %210 = vmatprep.subr.mxu0 0.0
  %211 = vmatpush1.xpose.msra.mxu0 0.0
  %212 = vmatprep.subr.mxu0 0.0
  %213 = vmatpush1.xpose.msra.mxu0 0.0
  %214 = vmatprep.subr.mxu0 0.0
  %215 = vmatpush1.xpose.msra.mxu0 0.0
  %216 = vmatprep.subr.mxu0 0.0
  %217 = vmatpush1.xpose.msra.mxu0 0.0
  %218 = vmatprep.subr.mxu0 0.0
  %219 = vmatpush1.xpose.msra.mxu0 0.0
  %220 = vmatprep.subr.mxu0 0.0
  %221 = vmatpush1.xpose.msra.mxu0 0.0
  %222 = vmatprep.subr.mxu0 0.0
  %223 = vmatpush1.xpose.msra.mxu0 0.0
  %224 = vmatprep.subr.mxu0 0.0
  %225 = vmatpush1.xpose.msra.mxu0 0.0
  %226 = vmatprep.subr.mxu0 0.0
  %227 = vmatpush1.xpose.msra.mxu0 0.0
  %228 = vmatprep.subr.mxu0 0.0
  %229 = vmatpush1.xpose.msra.mxu0 0.0
  %230 = vmatprep.subr.mxu0 0.0
  %231 = vmatpush1.xpose.msra.mxu0 0.0
  %232 = vmatprep.subr.mxu0 0.0
  %233 = vmatpush1.xpose.msra.mxu0 0.0
  %234 = vmatprep.subr.mxu0 0.0
  %235 = vmatpush1.xpose.msra.mxu0 0.0
  %236 = vmatprep.subr.mxu0 0.0
  %237 = vmatpush1.xpose.msra.mxu0 0.0
  %238 = vmatprep.subr.mxu0 0.0
  %239 = vmatpush1.xpose.msra.mxu0 0.0
  %240 = vmatprep.subr.mxu0 0.0
  %241 = vmatpush1.xpose.msra.mxu0 0.0
  %242 = vmatprep.subr.mxu0 0.0
  %243 = vmatpush1.xpose.msra.mxu0 0.0
  %244 = vmatprep.subr.mxu0 0.0
  %245 = vmatpush1.xpose.msra.mxu0 0.0
  %246 = vmatprep.subr.mxu0 0.0
  %247 = vmatpush1.xpose.msra.mxu0 0.0
  %248 = vmatprep.subr.mxu0 0.0
  %249 = vmatpush1.xpose.msra.mxu0 0.0
  %250 = vmatprep.subr.mxu0 0.0
  %251 = vmatpush1.xpose.msra.mxu0 0.0
  %252 = vmatprep.subr.mxu0 0.0
  %253 = vmatpush1.xpose.msra.mxu0 0.0
  %254 = vmatprep.subr.mxu0 0.0
  %255 = vmatpush1.xpose.msra.mxu0 0.0
  %256 = vmatprep.subr.mxu0 0.0
  %257 = vmatpush1.xpose.msra.mxu0 0.0
  %258 = vmatprep.subr.mxu0 0.0
  %259 = vmatpush1.xpose.msra.mxu0 0.0
  %260 = vmatprep.mubr.f32.mxu0 0.0
  %261 = vmatmul.mubr.f32.gmra.mrb[0].mxu0 %v180
  %v262 = vpop.f32.mrb[0].mxu0
  %v263 = vadd.f32 0.0, %v262
  %v264 = vpop.f32.mrb[0].mxu0
  %265 = vmatprep.mubr.f32.mxu0 0.0
  %266 = vmatmul.mubr.f32.gmra.mrb[0].mxu0 %v182
  %v267 = vpop.f32.mrb[0].mxu0
  %v268 = vadd.f32 0.0, %v267
  %v269 = vpop.f32.mrb[0].mxu0
  %270 = vmatprep.mubr.f32.mxu0 0.0
  %271 = vmatmul.mubr.f32.gmra.mrb[0].mxu0 %v184
  %v272 = vpop.f32.mrb[0].mxu0
  %v273 = vadd.f32 0.0, %v272
  %v274 = vpop.f32.mrb[0].mxu0
  %275 = vmatprep.mubr.f32.mxu0 0.0
  %276 = vmatmul.mubr.f32.gmra.mrb[0].mxu0 %v186
  %v277 = vpop.f32.mrb[0].mxu0
  %v278 = vadd.f32 0.0, %v277
  %v279 = vpop.f32.mrb[0].mxu0
  %280 = vdwg.mxu0
  %285 = vrot.lane.b32.xlu0 %v149, 112
  %v286 = vpop.permute.xlu0 %285
  %287 = vrot.lane.b32.xlu0 %v154, 112
  %v288 = vpop.permute.xlu0 %287
  %289 = vrot.lane.b32.xlu0 %v159, 112
  %v290 = vpop.permute.xlu0 %289
  %291 = vrot.lane.b32.xlu0 %v164, 112
  %v292 = vpop.permute.xlu0 %291
  %v293 = vsel %vm179, %v149, 0
  %v295 = vsel %vm179, %v154, 0
  %v297 = vsel %vm179, %v159, 0
  %v299 = vsel %vm179, %v164, 0
  %v301 = vsel %vm179, %v286, 0
  %v303 = vsel %vm179, %v288, 0
  %v305 = vsel %vm179, %v290, 0
  %v307 = vsel %vm179, %v292, 0
  %309 = vmatprep.subr.mxu0 0.0
  %310 = vmatpush1.xpose.msra.mxu0 %v301
  %311 = vmatprep.subr.mxu0 0.0
  %312 = vmatpush1.xpose.msra.mxu0 %v303
  %313 = vmatprep.subr.mxu0 0.0
  %314 = vmatpush1.xpose.msra.mxu0 %v305
  %315 = vmatprep.subr.mxu0 0.0
  %316 = vmatpush1.xpose.msra.mxu0 %v307
  %317 = vmatprep.subr.mxu0 0.0
  %318 = vmatpush1.xpose.msra.mxu0 0.0
  %319 = vmatprep.subr.mxu0 0.0
  %320 = vmatpush1.xpose.msra.mxu0 0.0
  %321 = vmatprep.subr.mxu0 0.0
  %322 = vmatpush1.xpose.msra.mxu0 0.0
  %323 = vmatprep.subr.mxu0 0.0
  %324 = vmatpush1.xpose.msra.mxu0 0.0
  %325 = vmatprep.subr.mxu0 0.0
  %326 = vmatpush1.xpose.msra.mxu0 0.0
  %327 = vmatprep.subr.mxu0 0.0
  %328 = vmatpush1.xpose.msra.mxu0 0.0
  %329 = vmatprep.subr.mxu0 0.0
  %330 = vmatpush1.xpose.msra.mxu0 0.0
  %331 = vmatprep.subr.mxu0 0.0
  %332 = vmatpush1.xpose.msra.mxu0 0.0
  %333 = vmatprep.subr.mxu0 0.0
  %334 = vmatpush1.xpose.msra.mxu0 0.0
  %335 = vmatprep.subr.mxu0 0.0
  %336 = vmatpush1.xpose.msra.mxu0 0.0
  %337 = vmatprep.subr.mxu0 0.0
  %338 = vmatpush1.xpose.msra.mxu0 0.0
  %339 = vmatprep.subr.mxu0 0.0
  %340 = vmatpush1.xpose.msra.mxu0 0.0
  %341 = vmatprep.subr.mxu0 0.0
  %342 = vmatpush1.xpose.msra.mxu0 0.0
  %343 = vmatprep.subr.mxu0 0.0
  %344 = vmatpush1.xpose.msra.mxu0 0.0
  %345 = vmatprep.subr.mxu0 0.0
  %346 = vmatpush1.xpose.msra.mxu0 0.0
  %347 = vmatprep.subr.mxu0 0.0
  %348 = vmatpush1.xpose.msra.mxu0 0.0
  %349 = vmatprep.subr.mxu0 0.0
  %350 = vmatpush1.xpose.msra.mxu0 0.0
  %351 = vmatprep.subr.mxu0 0.0
  %352 = vmatpush1.xpose.msra.mxu0 0.0
  %353 = vmatprep.subr.mxu0 0.0
  %354 = vmatpush1.xpose.msra.mxu0 0.0
  %355 = vmatprep.subr.mxu0 0.0
  %356 = vmatpush1.xpose.msra.mxu0 0.0
  %357 = vmatprep.subr.mxu0 0.0
  %358 = vmatpush1.xpose.msra.mxu0 0.0
  %359 = vmatprep.subr.mxu0 0.0
  %360 = vmatpush1.xpose.msra.mxu0 0.0
  %361 = vmatprep.subr.mxu0 0.0
  %362 = vmatpush1.xpose.msra.mxu0 0.0
  %363 = vmatprep.subr.mxu0 0.0
  %364 = vmatpush1.xpose.msra.mxu0 0.0
  %365 = vmatprep.subr.mxu0 0.0
  %366 = vmatpush1.xpose.msra.mxu0 0.0
  %367 = vmatprep.subr.mxu0 0.0
  %368 = vmatpush1.xpose.msra.mxu0 0.0
  %369 = vmatprep.subr.mxu0 0.0
  %370 = vmatpush1.xpose.msra.mxu0 0.0
  %371 = vmatprep.subr.mxu0 0.0
  %372 = vmatpush1.xpose.msra.mxu0 0.0
  %373 = vmatprep.mubr.f32.mxu0 0.0
  %374 = vmatmul.mubr.f32.gmra.mrb[0].mxu0 %v293
  %v375 = vpop.f32.mrb[0].mxu0
  %v376 = vadd.f32 0.0, %v375
  %v377 = vpop.f32.mrb[0].mxu0
  %378 = vmatprep.mubr.f32.mxu0 0.0
  %379 = vmatmul.mubr.f32.gmra.mrb[0].mxu0 %v295
  %v380 = vpop.f32.mrb[0].mxu0
  %v381 = vadd.f32 0.0, %v380
  %v382 = vpop.f32.mrb[0].mxu0
  %383 = vmatprep.mubr.f32.mxu0 0.0
  %384 = vmatmul.mubr.f32.gmra.mrb[0].mxu0 %v297
  %v385 = vpop.f32.mrb[0].mxu0
  %v386 = vadd.f32 0.0, %v385
  %v387 = vpop.f32.mrb[0].mxu0
  %388 = vmatprep.mubr.f32.mxu0 0.0
  %389 = vmatmul.mubr.f32.gmra.mrb[0].mxu0 %v299
  %v390 = vpop.f32.mrb[0].mxu0
  %v391 = vadd.f32 0.0, %v390
  %v392 = vpop.f32.mrb[0].mxu0
  %393 = vdwg.mxu0
  %v394 = vmul.f32 %v263, 0.125
  %v395 = vmul.f32 %v268, 0.125
  %v396 = vmul.f32 %v273, 0.125
  %v397 = vmul.f32 %v278, 0.125
  %v398 = vmul.f32 %v376, 0.125
  %v399 = vmul.f32 %v381, 0.125
  %v400 = vmul.f32 %v386, 0.125
  %v401 = vmul.f32 %v391, 0.125
  %v402 = vlaneseq
  %v403 = vshrl.u32 %v402, 7
  %v404 = vadd.s32 %v403, 8
  %v405 = vadd.s32 %v403, 16
  %v406 = vadd.s32 %v403, 24
  %v407 = vlaneseq
  %v408 = vand.u32 %v407, 127
  %vm409 = vcmp.le.s32.totalorder %v408, %v403
  %vm410 = vcmp.le.s32.totalorder %v408, %v404
  %vm411 = vcmp.le.s32.totalorder %v408, %v405
  %vm412 = vcmp.le.s32.totalorder %v408, %v406
  %v413 = vsel %vm409, 1, 0
  %v414 = vsel %vm410, 1, 0
  %v415 = vsel %vm411, 1, 0
  %v416 = vsel %vm412, 1, 0
  %vm417 = vcmp.eq.s32.totalorder %v413, 1
  %vm418 = vcmp.eq.s32.totalorder %v414, 1
  %vm419 = vcmp.eq.s32.totalorder %v415, 1
  %vm420 = vcmp.eq.s32.totalorder %v416, 1
  %v421 = vsel %vm417, %v394, -inf
  %v422 = vsel %vm418, %v395, -inf
  %v423 = vsel %vm419, %v396, -inf
  %v424 = vsel %vm420, %v397, -inf
  %v425 = vsel %vm417, %v398, -inf
  %v426 = vsel %vm418, %v399, -inf
  %v427 = vsel %vm419, %v400, -inf
  %v428 = vsel %vm420, %v401, -inf
  %vm429 = vcmask 261120
  %v430 = vsel %vm429, %v421, -inf
  %431 = vmax.xlane.f32.xlu0 %v430
  %v432 = vpop.xlane.xlu0 %431
  %v433 = vsel %vm429, %v422, -inf
  %434 = vmax.xlane.f32.xlu0 %v433
  %v435 = vpop.xlane.xlu0 %434
  %v436 = vsel %vm429, %v423, -inf
  %437 = vmax.xlane.f32.xlu0 %v436
  %v438 = vpop.xlane.xlu0 %437
  %v439 = vsel %vm429, %v424, -inf
  %440 = vmax.xlane.f32.xlu0 %v439
  %v441 = vpop.xlane.xlu0 %440
  %v442 = vsel %vm429, %v425, -inf
  %443 = vmax.xlane.f32.xlu0 %v442
  %v444 = vpop.xlane.xlu0 %443
  %v445 = vsel %vm429, %v426, -inf
  %446 = vmax.xlane.f32.xlu0 %v445
  %v447 = vpop.xlane.xlu0 %446
  %v448 = vsel %vm429, %v427, -inf
  %449 = vmax.xlane.f32.xlu0 %v448
  %v450 = vpop.xlane.xlu0 %449
  %v451 = vsel %vm429, %v428, -inf
  %452 = vmax.xlane.f32.xlu0 %v451
  %v453 = vpop.xlane.xlu0 %452
  %v454 = vsub.f32 %v421, %v432
  %v455 = vsub.f32 %v422, %v435
  %v456 = vsub.f32 %v423, %v438
  %v457 = vsub.f32 %v424, %v441
  %v458 = vsub.f32 %v425, %v444
  %v459 = vsub.f32 %v426, %v447
  %v460 = vsub.f32 %v427, %v450
  %v461 = vsub.f32 %v428, %v453
  %v462 = vmul.f32 %v454, 1.442695
  %v463 = vpow.pop %v462
  %v464 = vmul.f32 %v455, 1.442695
  %v465 = vpow.pop %v464
  %v466 = vmul.f32 %v456, 1.442695
  %v467 = vpow.pop %v466
  %v468 = vmul.f32 %v457, 1.442695
  %v469 = vpow.pop %v468
  %v470 = vmul.f32 %v458, 1.442695
  %v471 = vpow.pop %v470
  %v472 = vmul.f32 %v459, 1.442695
  %v473 = vpow.pop %v472
  %v474 = vmul.f32 %v460, 1.442695
  %v475 = vpow.pop %v474
  %v476 = vmul.f32 %v461, 1.442695
  %v477 = vpow.pop %v476
  %v478 = vsel %vm429, %v463, 0.0
  %479 = vadd.xlane.f32.xlu0 %v478
  %v480 = vpop.xlane.xlu0 %479
  %v481 = vsel %vm429, %v465, 0.0
  %482 = vadd.xlane.f32.xlu0 %v481
  %v483 = vpop.xlane.xlu0 %482
  %v484 = vsel %vm429, %v467, 0.0
  %485 = vadd.xlane.f32.xlu0 %v484
  %v486 = vpop.xlane.xlu0 %485
  %v487 = vsel %vm429, %v469, 0.0
  %488 = vadd.xlane.f32.xlu0 %v487
  %v489 = vpop.xlane.xlu0 %488
  %v490 = vsel %vm429, %v471, 0.0
  %491 = vadd.xlane.f32.xlu0 %v490
  %v492 = vpop.xlane.xlu0 %491
  %v493 = vsel %vm429, %v473, 0.0
  %494 = vadd.xlane.f32.xlu0 %v493
  %v495 = vpop.xlane.xlu0 %494
  %v496 = vsel %vm429, %v475, 0.0
  %497 = vadd.xlane.f32.xlu0 %v496
  %v498 = vpop.xlane.xlu0 %497
  %v499 = vsel %vm429, %v477, 0.0
  %500 = vadd.xlane.f32.xlu0 %v499
  %v501 = vpop.xlane.xlu0 %500
  %v502 = vrcp.pop %v480
  %v503 = vrcp.pop %v483
  %v504 = vrcp.pop %v486
  %v505 = vrcp.pop %v489
  %v506 = vrcp.pop %v492
  %v507 = vrcp.pop %v495
  %v508 = vrcp.pop %v498
  %v509 = vrcp.pop %v501
  %v510 = vmul.f32 %v463, %v502
  %v511 = vmul.f32 %v465, %v503
  %v512 = vmul.f32 %v467, %v504
  %v513 = vmul.f32 %v469, %v505
  %v514 = vmul.f32 %v471, %v506
  %v515 = vmul.f32 %v473, %v507
  %v516 = vmul.f32 %v475, %v508
  %v517 = vmul.f32 %v477, %v509
  %518 = vrot.lane.b32.xlu0 %v129, 96
  %v519 = vpop.permute.xlu0 %518
  %520 = vrot.lane.b32.xlu0 %v134, 96
  %v521 = vpop.permute.xlu0 %520
  %522 = vrot.lane.b32.xlu0 %v139, 96
  %v523 = vpop.permute.xlu0 %522
  %524 = vrot.lane.b32.xlu0 %v144, 96
  %v525 = vpop.permute.xlu0 %524
  %v531 = vsel %vm429, %v510, 0
  %v534 = vsel %vm429, %v511, 0
  %v537 = vsel %vm429, %v512, 0
  %v540 = vsel %vm429, %v513, 0
  %542 = vmatprep.subr.mxu0 0.0
  %543 = vmatpush1.msra.mxu0 %v519
  %544 = vmatprep.subr.mxu0 0.0
  %545 = vmatpush1.msra.mxu0 %v521
  %546 = vmatprep.subr.mxu0 0.0
  %547 = vmatpush1.msra.mxu0 %v523
  %548 = vmatprep.subr.mxu0 0.0
  %549 = vmatpush1.msra.mxu0 %v525
  %550 = vmatprep.subr.mxu0 0.0
  %551 = vmatpush1.msra.mxu0 0.0
  %552 = vmatprep.subr.mxu0 0.0
  %553 = vmatpush1.msra.mxu0 0.0
  %554 = vmatprep.subr.mxu0 0.0
  %555 = vmatpush1.msra.mxu0 0.0
  %556 = vmatprep.subr.mxu0 0.0
  %557 = vmatpush1.msra.mxu0 0.0
  %558 = vmatprep.subr.mxu0 0.0
  %559 = vmatpush1.msra.mxu0 0.0
  %560 = vmatprep.subr.mxu0 0.0
  %561 = vmatpush1.msra.mxu0 0.0
  %562 = vmatprep.subr.mxu0 0.0
  %563 = vmatpush1.msra.mxu0 0.0
  %564 = vmatprep.subr.mxu0 0.0
  %565 = vmatpush1.msra.mxu0 0.0
  %566 = vmatprep.subr.mxu0 0.0
  %567 = vmatpush1.msra.mxu0 0.0
  %568 = vmatprep.subr.mxu0 0.0
  %569 = vmatpush1.msra.mxu0 0.0
  %570 = vmatprep.subr.mxu0 0.0
  %571 = vmatpush1.msra.mxu0 0.0
  %572 = vmatprep.subr.mxu0 0.0
  %573 = vmatpush1.msra.mxu0 0.0
  %574 = vmatprep.subr.mxu0 0.0
  %575 = vmatpush1.msra.mxu0 0.0
  %576 = vmatprep.subr.mxu0 0.0
  %577 = vmatpush1.msra.mxu0 0.0
  %578 = vmatprep.subr.mxu0 0.0
  %579 = vmatpush1.msra.mxu0 0.0
  %580 = vmatprep.subr.mxu0 0.0
  %581 = vmatpush1.msra.mxu0 0.0
  %582 = vmatprep.subr.mxu0 0.0
  %583 = vmatpush1.msra.mxu0 0.0
  %584 = vmatprep.subr.mxu0 0.0
  %585 = vmatpush1.msra.mxu0 0.0
  %586 = vmatprep.subr.mxu0 0.0
  %587 = vmatpush1.msra.mxu0 0.0
  %588 = vmatprep.subr.mxu0 0.0
  %589 = vmatpush1.msra.mxu0 0.0
  %590 = vmatprep.subr.mxu0 0.0
  %591 = vmatpush1.msra.mxu0 0.0
  %592 = vmatprep.subr.mxu0 0.0
  %593 = vmatpush1.msra.mxu0 0.0
  %594 = vmatprep.subr.mxu0 0.0
  %595 = vmatpush1.msra.mxu0 0.0
  %596 = vmatprep.subr.mxu0 0.0
  %597 = vmatpush1.msra.mxu0 0.0
  %598 = vmatprep.subr.mxu0 0.0
  %599 = vmatpush1.msra.mxu0 0.0
  %600 = vmatprep.subr.mxu0 0.0
  %601 = vmatpush1.msra.mxu0 0.0
  %602 = vmatprep.subr.mxu0 0.0
  %603 = vmatpush1.msra.mxu0 0.0
  %604 = vmatprep.subr.mxu0 0.0
  %605 = vmatpush1.msra.mxu0 0.0
  %606 = vmatprep.mubr.f32.mxu0 0.0
  %607 = vmatmul.mubr.f32.gmra.mrb[0].mxu0 %v531
  %v608 = vpop.f32.mrb[0].mxu0
  %v609 = vadd.f32 0.0, %v608
  %v610 = vpop.f32.mrb[0].mxu0
  %611 = vmatprep.mubr.f32.mxu0 0.0
  %612 = vmatmul.mubr.f32.gmra.mrb[0].mxu0 %v534
  %v613 = vpop.f32.mrb[0].mxu0
  %v614 = vadd.f32 0.0, %v613
  %v615 = vpop.f32.mrb[0].mxu0
  %616 = vmatprep.mubr.f32.mxu0 0.0
  %617 = vmatmul.mubr.f32.gmra.mrb[0].mxu0 %v537
  %v618 = vpop.f32.mrb[0].mxu0
  %v619 = vadd.f32 0.0, %v618
  %v620 = vpop.f32.mrb[0].mxu0
  %621 = vmatprep.mubr.f32.mxu0 0.0
  %622 = vmatmul.mubr.f32.gmra.mrb[0].mxu0 %v540
  %v623 = vpop.f32.mrb[0].mxu0
  %v624 = vadd.f32 0.0, %v623
  %v625 = vpop.f32.mrb[0].mxu0
  %626 = vdwg.mxu0
  %627 = vrot.lane.b32.xlu0 %v149, 96
  %v628 = vpop.permute.xlu0 %627
  %629 = vrot.lane.b32.xlu0 %v154, 96
  %v630 = vpop.permute.xlu0 %629
  %631 = vrot.lane.b32.xlu0 %v159, 96
  %v632 = vpop.permute.xlu0 %631
  %633 = vrot.lane.b32.xlu0 %v164, 96
  %v634 = vpop.permute.xlu0 %633
  %v640 = vsel %vm429, %v514, 0
  %v643 = vsel %vm429, %v515, 0
  %v646 = vsel %vm429, %v516, 0
  %v649 = vsel %vm429, %v517, 0
  %651 = vmatprep.subr.mxu0 0.0
  %652 = vmatpush1.msra.mxu0 %v628
  %653 = vmatprep.subr.mxu0 0.0
  %654 = vmatpush1.msra.mxu0 %v630
  %655 = vmatprep.subr.mxu0 0.0
  %656 = vmatpush1.msra.mxu0 %v632
  %657 = vmatprep.subr.mxu0 0.0
  %658 = vmatpush1.msra.mxu0 %v634
  %659 = vmatprep.subr.mxu0 0.0
  %660 = vmatpush1.msra.mxu0 0.0
  %661 = vmatprep.subr.mxu0 0.0
  %662 = vmatpush1.msra.mxu0 0.0
  %663 = vmatprep.subr.mxu0 0.0
  %664 = vmatpush1.msra.mxu0 0.0
  %665 = vmatprep.subr.mxu0 0.0
  %666 = vmatpush1.msra.mxu0 0.0
  %667 = vmatprep.subr.mxu0 0.0
  %668 = vmatpush1.msra.mxu0 0.0
  %669 = vmatprep.subr.mxu0 0.0
  %670 = vmatpush1.msra.mxu0 0.0
  %671 = vmatprep.subr.mxu0 0.0
  %672 = vmatpush1.msra.mxu0 0.0
  %673 = vmatprep.subr.mxu0 0.0
  %674 = vmatpush1.msra.mxu0 0.0
  %675 = vmatprep.subr.mxu0 0.0
  %676 = vmatpush1.msra.mxu0 0.0
  %677 = vmatprep.subr.mxu0 0.0
  %678 = vmatpush1.msra.mxu0 0.0
  %679 = vmatprep.subr.mxu0 0.0
  %680 = vmatpush1.msra.mxu0 0.0
  %681 = vmatprep.subr.mxu0 0.0
  %682 = vmatpush1.msra.mxu0 0.0
  %683 = vmatprep.subr.mxu0 0.0
  %684 = vmatpush1.msra.mxu0 0.0
  %685 = vmatprep.subr.mxu0 0.0
  %686 = vmatpush1.msra.mxu0 0.0
  %687 = vmatprep.subr.mxu0 0.0
  %688 = vmatpush1.msra.mxu0 0.0
  %689 = vmatprep.subr.mxu0 0.0
  %690 = vmatpush1.msra.mxu0 0.0
  %691 = vmatprep.subr.mxu0 0.0
  %692 = vmatpush1.msra.mxu0 0.0
  %693 = vmatprep.subr.mxu0 0.0
  %694 = vmatpush1.msra.mxu0 0.0
  %695 = vmatprep.subr.mxu0 0.0
  %696 = vmatpush1.msra.mxu0 0.0
  %697 = vmatprep.subr.mxu0 0.0
  %698 = vmatpush1.msra.mxu0 0.0
  %699 = vmatprep.subr.mxu0 0.0
  %700 = vmatpush1.msra.mxu0 0.0
  %701 = vmatprep.subr.mxu0 0.0
  %702 = vmatpush1.msra.mxu0 0.0
  %703 = vmatprep.subr.mxu0 0.0
  %704 = vmatpush1.msra.mxu0 0.0
  %705 = vmatprep.subr.mxu0 0.0
  %706 = vmatpush1.msra.mxu0 0.0
  %707 = vmatprep.subr.mxu0 0.0
  %708 = vmatpush1.msra.mxu0 0.0
  %709 = vmatprep.subr.mxu0 0.0
  %710 = vmatpush1.msra.mxu0 0.0
  %711 = vmatprep.subr.mxu0 0.0
  %712 = vmatpush1.msra.mxu0 0.0
  %713 = vmatprep.subr.mxu0 0.0
  %714 = vmatpush1.msra.mxu0 0.0
  %715 = vmatprep.mubr.f32.mxu0 0.0
  %716 = vmatmul.mubr.f32.gmra.mrb[0].mxu0 %v640
  %v717 = vpop.f32.mrb[0].mxu0
  %v718 = vadd.f32 0.0, %v717
  %v719 = vpop.f32.mrb[0].mxu0
  %720 = vmatprep.mubr.f32.mxu0 0.0
  %721 = vmatmul.mubr.f32.gmra.mrb[0].mxu0 %v643
  %v722 = vpop.f32.mrb[0].mxu0
  %v723 = vadd.f32 0.0, %v722
  %v724 = vpop.f32.mrb[0].mxu0
  %725 = vmatprep.mubr.f32.mxu0 0.0
  %726 = vmatmul.mubr.f32.gmra.mrb[0].mxu0 %v646
  %v727 = vpop.f32.mrb[0].mxu0
  %v728 = vadd.f32 0.0, %v727
  %v729 = vpop.f32.mrb[0].mxu0
  %730 = vmatprep.mubr.f32.mxu0 0.0
  %731 = vmatmul.mubr.f32.gmra.mrb[0].mxu0 %v649
  %v732 = vpop.f32.mrb[0].mxu0
  %v733 = vadd.f32 0.0, %v732
  %v734 = vpop.f32.mrb[0].mxu0
  %735 = vdwg.mxu0
  %736 = vst.msk [vmem:[%s3] sm:$0xff] %vm179, %v609
  %737 = vst.msk [vmem:[%s3 + $0x8] sm:$0xff] %vm179, %v614
  %738 = vst.msk [vmem:[%s3 + $0x10] sm:$0xff] %vm179, %v619
  %739 = vst.msk [vmem:[%s3 + $0x18] sm:$0xff] %vm179, %v624
  %740 = vst.msk [vmem:[%s3 + $0x20] sm:$0xff] %vm179, %v718
  %741 = vst.msk [vmem:[%s3 + $0x28] sm:$0xff] %vm179, %v723
  %742 = vst.msk [vmem:[%s3 + $0x30] sm:$0xff] %vm179, %v728
  %743 = vst.msk [vmem:[%s3 + $0x38] sm:$0xff] %vm179, %v733
  // Predicated region
  $region14: #{tpu_custom_call.1} parent=0 // pred_check
    _
  $region15: #{tpu_custom_call.1} parent=0 // pred_check_branch
    %745 = sbr.rel (0) target = $region17
  $region16: #{tpu_custom_call.1} parent=0 // pred_region
    _
  $region17: #{tpu_custom_call.1} parent=0 // pred_fallthru
    _
  // Predicated region
  $region18: #{tpu_custom_call.1} parent=0 // pred_check
    _
  $region19: #{tpu_custom_call.1} parent=0 // pred_check_branch
    %747 = sbr.rel (0) target = $region21
  $region20: #{tpu_custom_call.1} parent=0 // pred_region
    _
  $region21: #{tpu_custom_call.1} parent=0 // pred_fallthru
    _

</llo_original>
